<compile_context>
chip_gen: v7x
topology: tpu7x:2x2x1
jax: 0.10.0
libtpu: 0.0.40
codegen_flags: <defaults>
</compile_context>

<pallas_src>
import functools
import math

import numpy as np
import jax
import jax.numpy as jnp
from jax.experimental import pallas as pl
from jax.experimental.pallas import tpu as pltpu

PRED_DIM = 24
OUT_PAD = 128   # lane-dense combined (policy | pred | zero-pad) output width
ALIGN = 16      # sublane alignment safe for both f32 (8) and bf16 (16) tiles


def _cdiv(a, b):
    return (a + b - 1) // b


def _round_up(a, b):
    return _cdiv(a, b) * b


def _actor_kernel(x_ref, p_ref, w1_ref, b1_ref, w2_ref, b2_ref, w3_ref, b3_ref,
                  wpq_ref, bpq_ref, out_ref, *, output_dim, eps, approx_recip,
                  compute_dtype):
    xf = x_ref[...].astype(jnp.float32)                       # (TM, flat_dim), f32 stats

    # --- group LayerNorm via block-diagonal averaging matrix P; centered variance ---
    mean_b = jnp.dot(xf, p_ref[...], preferred_element_type=jnp.float32)
    xc = xf - mean_b
    var_b = jnp.dot(xc * xc, p_ref[...], preferred_element_type=jnp.float32)
    xn = xc * jax.lax.rsqrt(var_b + eps)
    # gamma/beta are folded into w1/b1 by prepare_actor_params.

    # --- fc: 3 x (Linear + ReLU); matmul operands in compute_dtype, f32 accumulate ---
    h = jnp.maximum(jnp.dot(xn.astype(compute_dtype), w1_ref[...],
                            preferred_element_type=jnp.float32) + b1_ref[...], 0.0)
    h = jnp.maximum(jnp.dot(h.astype(compute_dtype), w2_ref[...],
                            preferred_element_type=jnp.float32) + b2_ref[...], 0.0)
    h = jnp.maximum(jnp.dot(h.astype(compute_dtype), w3_ref[...],
                            preferred_element_type=jnp.float32) + b3_ref[...], 0.0)

    # --- fused policy + pred heads (zero-padded to OUT_PAD lanes), softmax on policy cols ---
    heads = jnp.dot(h.astype(compute_dtype), wpq_ref[...],
                    preferred_element_type=jnp.float32) + bpq_ref[...]    # (TM, OUT_PAD)
    col = jax.lax.broadcasted_iota(jnp.int32, heads.shape, 1)
    is_policy = col < output_dim
    logits = jnp.where(is_policy, heads, -1e30)
    mx = jnp.max(logits, axis=-1, keepdims=True)
    e = jnp.where(is_policy, jnp.exp(logits - mx), 0.0)
    inv = pl.reciprocal(jnp.sum(e, axis=-1, keepdims=True), approx=approx_recip)
    out_ref[...] = jnp.where(is_policy, e * inv, heads).astype(out_ref.dtype)


def init_actor_params(key, input_dim, output_dim, hidden_dim=128):
    """Synthetic init mirroring ActorNet.__init__: orthogonal(gain=sqrt(2)) weights,
    zero biases, LayerNorm gamma=1 / beta=0.  Weights stored (in, out); y = x@W + b."""
    n, f = input_dim
    flat_dim = n * f
    ortho = jax.nn.initializers.orthogonal(scale=math.sqrt(2.0))
    ks = jax.random.split(key, 5)
    return {
        "gamma": jnp.ones((f,), jnp.float32),
        "beta": jnp.zeros((f,), jnp.float32),
        "w1": ortho(ks[0], (flat_dim, hidden_dim), jnp.float32),
        "b1": jnp.zeros((hidden_dim,), jnp.float32),
        "w2": ortho(ks[1], (hidden_dim, hidden_dim), jnp.float32),
        "b2": jnp.zeros((hidden_dim,), jnp.float32),
        "w3": ortho(ks[2], (hidden_dim, hidden_dim), jnp.float32),
        "b3": jnp.zeros((hidden_dim,), jnp.float32),
        "wp": ortho(ks[3], (hidden_dim, output_dim), jnp.float32),
        "bp": jnp.zeros((output_dim,), jnp.float32),
        "wq": ortho(ks[4], (hidden_dim, PRED_DIM), jnp.float32),
        "bq": jnp.zeros((PRED_DIM,), jnp.float32),
    }


def prepare_actor_params(params, *, input_dim, matmul_dtype=jnp.bfloat16):
    """One-time (out of the per-call path) constant folding:
       - block-diagonal averaging matrix P for the group LayerNorm stats (kept f32),
       - gamma/beta folded into fc1,
       - policy+pred head weights concatenated and zero-padded to OUT_PAD lanes,
       - matmul weights cast to matmul_dtype.  bf16 is MXU-native on v5e/v6e/v7x and is
         the default for all generations; pass f32 only for strict numerical testing."""
    n, f = input_dim
    g = jnp.repeat(jnp.eye(n, dtype=jnp.float32), f, axis=0)          # (flat, n)
    p_avg = (g @ g.T) / float(f)                                      # (flat, flat)

    gamma_flat = jnp.tile(params["gamma"].astype(jnp.float32), n)     # (flat,)
    beta_flat = jnp.tile(params["beta"].astype(jnp.float32), n)
    w1 = params["w1"].astype(jnp.float32)
    w1f = gamma_flat[:, None] * w1
    b1f = beta_flat @ w1 + params["b1"].astype(jnp.float32)

    wpq = jnp.concatenate([params["wp"], params["wq"]], axis=1).astype(jnp.float32)
    bpq = jnp.concatenate([params["bp"], params["bq"]], axis=0).astype(jnp.float32)
    wpq = jnp.pad(wpq, ((0, 0), (0, OUT_PAD - wpq.shape[1])))
    bpq = jnp.pad(bpq, ((0, OUT_PAD - bpq.shape[0]),))

    return {
        "p_avg": p_avg,                                               # stays f32
        "w1": w1f.astype(matmul_dtype), "b1": b1f.reshape(1, -1),
        "w2": params["w2"].astype(matmul_dtype),
        "b2": params["b2"].astype(jnp.float32).reshape(1, -1),
        "w3": params["w3"].astype(matmul_dtype),
        "b3": params["b3"].astype(jnp.float32).reshape(1, -1),
        "wpq": wpq.astype(matmul_dtype), "bpq": bpq.reshape(1, -1),
    }


def social_light_forward(x, h_n, mask, prep, *, input_dim, output_dim, agent_dim,
                         num_meta=1, hidden_dim=128, tm=512, eps=1e-5,
                         approx_recip=True, out_dtype=jnp.bfloat16):
    """Equivalent of SocialLightModel.forward -> (policy, pred, h_n)."""
    del mask  # unused by the PyTorch forward as well
    n, f = input_dim
    flat_dim = n * f
    b = x.shape[0]
    m = b * agent_dim * num_meta
    compute_dtype = prep["w1"].dtype

    # Row tiling gated on work size: a single grid step for small m (the grid is a serial
    # loop on v5e/v6e, and megacore only pays off with >= ~256 rows per core); large tiles
    # for big m to amortize per-step overhead.  No wrapper-side padding of x: Pallas handles
    # a ragged last block (all per-row math; OOB output rows are dropped).
    tm = max(ALIGN, _round_up(tm, ALIGN))
    if m <= tm:
        tm_eff = _round_up(max(m, ALIGN), ALIGN)
        grid_m = 1
    else:
        tm_eff = tm
        grid_m = _cdiv(m, tm_eff)

    x_flat = x.reshape(m, flat_dim).astype(jnp.float32)   # f32 in HBM -> exact LN stats

    kernel = functools.partial(_actor_kernel, output_dim=output_dim, eps=eps,
                               approx_recip=approx_recip, compute_dtype=compute_dtype)
    row = lambda i: (i, 0)
    rep = lambda i: (0, 0)

    out = pl.pallas_call(
        kernel,
        out_shape=jax.ShapeDtypeStruct((m, OUT_PAD), out_dtype),
        grid=(grid_m,),
        in_specs=[
            pl.BlockSpec((tm_eff, flat_dim), row),            # x rows
            pl.BlockSpec((flat_dim, flat_dim), rep),          # P averaging matrix (f32)
            pl.BlockSpec((flat_dim, hidden_dim), rep),        # fc1 (gamma/beta folded)
            pl.BlockSpec((1, hidden_dim), rep),
            pl.BlockSpec((hidden_dim, hidden_dim), rep),      # fc2
            pl.BlockSpec((1, hidden_dim), rep),
            pl.BlockSpec((hidden_dim, hidden_dim), rep),      # fc3
            pl.BlockSpec((1, hidden_dim), rep),
            pl.BlockSpec((hidden_dim, OUT_PAD), rep),         # fused policy|pred head
            pl.BlockSpec((1, OUT_PAD), rep),
        ],
        out_specs=pl.BlockSpec((tm_eff, OUT_PAD), row),
        compiler_params=pltpu.CompilerParams(dimension_semantics=("parallel",)),
    )(x_flat, prep["p_avg"], prep["w1"], prep["b1"], prep["w2"], prep["b2"],
      prep["w3"], prep["b3"], prep["wpq"], prep["bpq"])

    # One contiguous column slice, then split policy/pred from the narrow slab.
    out3 = out.reshape(b, agent_dim * num_meta, OUT_PAD)
    head = out3[..., :output_dim + PRED_DIM]
    policy = head[..., :output_dim]
    pred = head[..., output_dim:]
    return policy, pred, h_n  # h_n is a passthrough, exactly as in PyTorch


def reference_forward(x, params, input_dim, output_dim, agent_dim, num_meta=1, eps=1e-5):
    """Pure-JAX f32 reference mirroring the PyTorch ActorNet.forward."""
    n, f = input_dim
    xr = x.astype(jnp.float32).reshape(-1, f)
    mean = xr.mean(-1, keepdims=True)
    var = ((xr - mean) ** 2).mean(-1, keepdims=True)
    xn = (xr - mean) / jnp.sqrt(var + eps) * params["gamma"] + params["beta"]
    xn = xn.reshape(-1, agent_dim * num_meta, n * f)
    h = jax.nn.relu(xn @ params["w1"] + params["b1"])
    h = jax.nn.relu(h @ params["w2"] + params["b2"])
    h = jax.nn.relu(h @ params["w3"] + params["b3"])
    policy = jax.nn.softmax(h @ params["wp"] + params["bp"], axis=-1)
    pred = h @ params["wq"] + params["bq"]
    return policy, pred


if __name__ == "__main__":
    # small shapes consistent with the module: input_dim = (neighbors=5, feat=8)
    input_dim = (5, 8)
    output_dim = 4
    agent_dim = 4
    num_meta = 1
    batch = 4

    key = jax.random.PRNGKey(0)
    kx, kp = jax.random.split(key)
    x = jax.random.normal(kx, (batch, agent_dim * num_meta, input_dim[0], input_dim[1]),
                          dtype=jnp.float32)
    h_n = jnp.zeros((batch, agent_dim * num_meta, 128), jnp.float32)  # passthrough state
    mask = jnp.ones((batch, agent_dim * num_meta), jnp.float32)       # unused by forward
    params = init_actor_params(kp, input_dim, output_dim)

    ref_policy, ref_pred = reference_forward(x, params, input_dim, output_dim,
                                             agent_dim, num_meta)

    # --- strict path: f32 matmul operands, f32 output, exact reciprocal -> 1e-4 tol ---
    prep_f32 = prepare_actor_params(params, input_dim=input_dim, matmul_dtype=jnp.float32)
    fwd_f32 = jax.jit(functools.partial(
        social_light_forward, input_dim=input_dim, output_dim=output_dim,
        agent_dim=agent_dim, num_meta=num_meta, approx_recip=False,
        out_dtype=jnp.float32))
    policy, pred, h_out = fwd_f32(x, h_n, mask, prep_f32)
    jax.block_until_ready((policy, pred, h_out))
    np.testing.assert_allclose(np.asarray(policy), np.asarray(ref_policy),
                               rtol=1e-4, atol=1e-4)
    np.testing.assert_allclose(np.asarray(pred), np.asarray(ref_pred),
                               rtol=1e-4, atol=1e-4)
    assert policy.shape == (batch, agent_dim * num_meta, output_dim)
    assert pred.shape == (batch, agent_dim * num_meta, PRED_DIM)
    assert h_out.shape == h_n.shape

    # --- fast path (default): bf16 matmuls + bf16 lane-dense output store + EUP recip ---
    prep_bf16 = prepare_actor_params(params, input_dim=input_dim)
    fwd_bf16 = jax.jit(functools.partial(
        social_light_forward, input_dim=input_dim, output_dim=output_dim,
        agent_dim=agent_dim, num_meta=num_meta, approx_recip=True,
        out_dtype=jnp.bfloat16))
    policy16, pred16, _ = fwd_bf16(x, h_n, mask, prep_bf16)
    jax.block_until_ready((policy16, pred16))
    np.testing.assert_allclose(np.asarray(policy16.astype(jnp.float32)),
                               np.asarray(ref_policy), rtol=5e-2, atol=5e-2)
    np.testing.assert_allclose(np.asarray(pred16.astype(jnp.float32)),
                               np.asarray(ref_pred), rtol=5e-2, atol=1e-1)

    print("KERNEL_OK")
</pallas_src>

<mosaic_0001>
module attributes {stable_mosaic.version = 11 : i64} {
  func.func @_actor_kernel(%arg0: i32, %arg1: memref<16x40xf32, #tpu.memory_space<vmem>>, %arg2: memref<40x40xf32, #tpu.memory_space<vmem>>, %arg3: memref<40x128xf32, #tpu.memory_space<vmem>>, %arg4: memref<1x128xf32, #tpu.memory_space<vmem>>, %arg5: memref<128x128xf32, #tpu.memory_space<vmem>>, %arg6: memref<1x128xf32, #tpu.memory_space<vmem>>, %arg7: memref<128x128xf32, #tpu.memory_space<vmem>>, %arg8: memref<1x128xf32, #tpu.memory_space<vmem>>, %arg9: memref<128x128xf32, #tpu.memory_space<vmem>>, %arg10: memref<1x128xf32, #tpu.memory_space<vmem>>, %arg11: memref<16x128xf32, #tpu.memory_space<vmem>>) attributes {dimension_semantics = [#tpu.dimension_semantics<parallel>], iteration_bounds = array<i64: 1>, scalar_prefetch = 0 : i64, scratch_operands = 0 : i64, tpu.core_type = #tpu.core_type<tc>, window_params = [{transform_indices = @transform_0, window_bounds = array<i64: 16, 40>}, {pipeline_mode = #tpu.pipeline_mode<synchronous>, transform_indices = @transform_1, window_bounds = array<i64: 40, 40>}, {pipeline_mode = #tpu.pipeline_mode<synchronous>, transform_indices = @transform_2, window_bounds = array<i64: 40, 128>}, {pipeline_mode = #tpu.pipeline_mode<synchronous>, transform_indices = @transform_3, window_bounds = array<i64: 1, 128>}, {pipeline_mode = #tpu.pipeline_mode<synchronous>, transform_indices = @transform_4, window_bounds = array<i64: 128, 128>}, {pipeline_mode = #tpu.pipeline_mode<synchronous>, transform_indices = @transform_5, window_bounds = array<i64: 1, 128>}, {pipeline_mode = #tpu.pipeline_mode<synchronous>, transform_indices = @transform_6, window_bounds = array<i64: 128, 128>}, {pipeline_mode = #tpu.pipeline_mode<synchronous>, transform_indices = @transform_7, window_bounds = array<i64: 1, 128>}, {pipeline_mode = #tpu.pipeline_mode<synchronous>, transform_indices = @transform_8, window_bounds = array<i64: 128, 128>}, {pipeline_mode = #tpu.pipeline_mode<synchronous>, transform_indices = @transform_9, window_bounds = array<i64: 1, 128>}, {transform_indices = @transform_10, window_bounds = array<i64: 16, 128>}]} {
    %c0 = arith.constant 0 : index
    %c0_0 = arith.constant 0 : index
    %0 = vector.load %arg1[%c0, %c0_0] : memref<16x40xf32, #tpu.memory_space<vmem>>, vector<16x40xf32>
    %c0_1 = arith.constant 0 : index
    %c0_2 = arith.constant 0 : index
    %1 = vector.load %arg2[%c0_1, %c0_2] : memref<40x40xf32, #tpu.memory_space<vmem>>, vector<40x40xf32>
    %cst = arith.constant dense<0.000000e+00> : vector<16x40xf32>
    %2 = tpu.matmul %0, %1, %cst {dimension_numbers = #tpu.dot_dimension_numbers<[1], [0], [0], [1], [0, 0, 1, 1], [], []>} : vector<16x40xf32>, vector<40x40xf32>, vector<16x40xf32> -> vector<16x40xf32>
    %3 = arith.subf %0, %2 : vector<16x40xf32>
    %4 = arith.mulf %3, %3 : vector<16x40xf32>
    %c0_3 = arith.constant 0 : index
    %c0_4 = arith.constant 0 : index
    %5 = vector.load %arg2[%c0_3, %c0_4] : memref<40x40xf32, #tpu.memory_space<vmem>>, vector<40x40xf32>
    %cst_5 = arith.constant dense<0.000000e+00> : vector<16x40xf32>
    %6 = tpu.matmul %4, %5, %cst_5 {dimension_numbers = #tpu.dot_dimension_numbers<[1], [0], [0], [1], [0, 0, 1, 1], [], []>} : vector<16x40xf32>, vector<40x40xf32>, vector<16x40xf32> -> vector<16x40xf32>
    %cst_6 = arith.constant 9.99999974E-6 : f32
    %7 = vector.broadcast %cst_6 : f32 to vector<16x40xf32>
    %8 = arith.addf %6, %7 : vector<16x40xf32>
    %9 = math.rsqrt %8 : vector<16x40xf32>
    %10 = arith.mulf %3, %9 : vector<16x40xf32>
    %c0_7 = arith.constant 0 : index
    %c0_8 = arith.constant 0 : index
    %11 = vector.load %arg3[%c0_7, %c0_8] : memref<40x128xf32, #tpu.memory_space<vmem>>, vector<40x128xf32>
    %cst_9 = arith.constant dense<0.000000e+00> : vector<16x128xf32>
    %12 = tpu.matmul %10, %11, %cst_9 {dimension_numbers = #tpu.dot_dimension_numbers<[1], [0], [0], [1], [0, 0, 1, 1], [], []>} : vector<16x40xf32>, vector<40x128xf32>, vector<16x128xf32> -> vector<16x128xf32>
    %c0_10 = arith.constant 0 : index
    %c0_11 = arith.constant 0 : index
    %13 = vector.load %arg4[%c0_10, %c0_11] : memref<1x128xf32, #tpu.memory_space<vmem>>, vector<1x128xf32>
    %14 = vector.broadcast %13 : vector<1x128xf32> to vector<16x128xf32>
    %15 = arith.addf %12, %14 : vector<16x128xf32>
    %cst_12 = arith.constant 0.000000e+00 : f32
    %16 = vector.broadcast %cst_12 : f32 to vector<16x128xf32>
    %17 = arith.maximumf %15, %16 : vector<16x128xf32>
    %c0_13 = arith.constant 0 : index
    %c0_14 = arith.constant 0 : index
    %18 = vector.load %arg5[%c0_13, %c0_14] : memref<128x128xf32, #tpu.memory_space<vmem>>, vector<128x128xf32>
    %cst_15 = arith.constant dense<0.000000e+00> : vector<16x128xf32>
    %19 = tpu.matmul %17, %18, %cst_15 {dimension_numbers = #tpu.dot_dimension_numbers<[1], [0], [0], [1], [0, 0, 1, 1], [], []>} : vector<16x128xf32>, vector<128x128xf32>, vector<16x128xf32> -> vector<16x128xf32>
    %c0_16 = arith.constant 0 : index
    %c0_17 = arith.constant 0 : index
    %20 = vector.load %arg6[%c0_16, %c0_17] : memref<1x128xf32, #tpu.memory_space<vmem>>, vector<1x128xf32>
    %21 = vector.broadcast %20 : vector<1x128xf32> to vector<16x128xf32>
    %22 = arith.addf %19, %21 : vector<16x128xf32>
    %cst_18 = arith.constant 0.000000e+00 : f32
    %23 = vector.broadcast %cst_18 : f32 to vector<16x128xf32>
    %24 = arith.maximumf %22, %23 : vector<16x128xf32>
    %c0_19 = arith.constant 0 : index
    %c0_20 = arith.constant 0 : index
    %25 = vector.load %arg7[%c0_19, %c0_20] : memref<128x128xf32, #tpu.memory_space<vmem>>, vector<128x128xf32>
    %cst_21 = arith.constant dense<0.000000e+00> : vector<16x128xf32>
    %26 = tpu.matmul %24, %25, %cst_21 {dimension_numbers = #tpu.dot_dimension_numbers<[1], [0], [0], [1], [0, 0, 1, 1], [], []>} : vector<16x128xf32>, vector<128x128xf32>, vector<16x128xf32> -> vector<16x128xf32>
    %c0_22 = arith.constant 0 : index
    %c0_23 = arith.constant 0 : index
    %27 = vector.load %arg8[%c0_22, %c0_23] : memref<1x128xf32, #tpu.memory_space<vmem>>, vector<1x128xf32>
    %28 = vector.broadcast %27 : vector<1x128xf32> to vector<16x128xf32>
    %29 = arith.addf %26, %28 : vector<16x128xf32>
    %cst_24 = arith.constant 0.000000e+00 : f32
    %30 = vector.broadcast %cst_24 : f32 to vector<16x128xf32>
    %31 = arith.maximumf %29, %30 : vector<16x128xf32>
    %c0_25 = arith.constant 0 : index
    %c0_26 = arith.constant 0 : index
    %32 = vector.load %arg9[%c0_25, %c0_26] : memref<128x128xf32, #tpu.memory_space<vmem>>, vector<128x128xf32>
    %cst_27 = arith.constant dense<0.000000e+00> : vector<16x128xf32>
    %33 = tpu.matmul %31, %32, %cst_27 {dimension_numbers = #tpu.dot_dimension_numbers<[1], [0], [0], [1], [0, 0, 1, 1], [], []>} : vector<16x128xf32>, vector<128x128xf32>, vector<16x128xf32> -> vector<16x128xf32>
    %c0_28 = arith.constant 0 : index
    %c0_29 = arith.constant 0 : index
    %34 = vector.load %arg10[%c0_28, %c0_29] : memref<1x128xf32, #tpu.memory_space<vmem>>, vector<1x128xf32>
    %35 = vector.broadcast %34 : vector<1x128xf32> to vector<16x128xf32>
    %36 = arith.addf %33, %35 : vector<16x128xf32>
    %37 = tpu.iota {dimensions = array<i32: 1>} : vector<16x128xi32>
    %c4_i32 = arith.constant 4 : i32
    %38 = vector.broadcast %c4_i32 : i32 to vector<16x128xi32>
    %39 = arith.cmpi slt, %37, %38 : vector<16x128xi32>
    %cst_30 = arith.constant -1.000000e+30 : f32
    %40 = vector.broadcast %cst_30 : f32 to vector<16x128xf32>
    %41 = arith.select %39, %36, %40 : vector<16x128xi1>, vector<16x128xf32>
    %cst_31 = arith.constant dense<0xFF800000> : vector<16xf32>
    %42 = vector.multi_reduction <maximumf>, %41, %cst_31 [1] : vector<16x128xf32> to vector<16xf32>
    %43 = vector.shape_cast %42 : vector<16xf32> to vector<16x1xf32>
    %44 = vector.broadcast %43 : vector<16x1xf32> to vector<16x128xf32>
    %45 = arith.subf %41, %44 : vector<16x128xf32>
    %46 = math.exp %45 : vector<16x128xf32>
    %cst_32 = arith.constant 0.000000e+00 : f32
    %47 = vector.broadcast %cst_32 : f32 to vector<16x128xf32>
    %48 = arith.select %39, %46, %47 : vector<16x128xi1>, vector<16x128xf32>
    %cst_33 = arith.constant dense<0.000000e+00> : vector<16xf32>
    %49 = vector.multi_reduction <add>, %48, %cst_33 [1] : vector<16x128xf32> to vector<16xf32>
    %50 = vector.shape_cast %49 : vector<16xf32> to vector<16x1xf32>
    %51 = tpu.reciprocal %50 : vector<16x1xf32> -> vector<16x1xf32>
    %52 = vector.broadcast %51 : vector<16x1xf32> to vector<16x128xf32>
    %53 = arith.mulf %48, %52 : vector<16x128xf32>
    %54 = arith.select %39, %53, %36 : vector<16x128xi1>, vector<16x128xf32>
    %c0_34 = arith.constant 0 : index
    %c0_35 = arith.constant 0 : index
    %55 = vector.load %arg11[%c0_34, %c0_35] : memref<16x128xf32, #tpu.memory_space<vmem>>, vector<16x128xf32>
    tpu.vector_store %arg11[%c0_34, %c0_35], %54 {strides = array<i32>} : memref<16x128xf32, #tpu.memory_space<vmem>>, vector<16x128xf32>,
    return
  }
  func.func @transform_0(%arg0: i32) -> (i32, i32) {
    %c0_i32 = arith.constant 0 : i32
    %c0_i32_0 = arith.constant 0 : i32
    return %arg0, %c0_i32 : i32, i32
  }
  func.func @transform_1(%arg0: i32) -> (i32, i32) {
    %c0_i32 = arith.constant 0 : i32
    %c0_i32_0 = arith.constant 0 : i32
    %c0_i32_1 = arith.constant 0 : i32
    return %c0_i32, %c0_i32_0 : i32, i32
  }
  func.func @transform_2(%arg0: i32) -> (i32, i32) {
    %c0_i32 = arith.constant 0 : i32
    %c0_i32_0 = arith.constant 0 : i32
    %c0_i32_1 = arith.constant 0 : i32
    return %c0_i32, %c0_i32_0 : i32, i32
  }
  func.func @transform_3(%arg0: i32) -> (i32, i32) {
    %c0_i32 = arith.constant 0 : i32
    %c0_i32_0 = arith.constant 0 : i32
    %c0_i32_1 = arith.constant 0 : i32
    return %c0_i32, %c0_i32_0 : i32, i32
  }
  func.func @transform_4(%arg0: i32) -> (i32, i32) {
    %c0_i32 = arith.constant 0 : i32
    %c0_i32_0 = arith.constant 0 : i32
    %c0_i32_1 = arith.constant 0 : i32
    return %c0_i32, %c0_i32_0 : i32, i32
  }
  func.func @transform_5(%arg0: i32) -> (i32, i32) {
    %c0_i32 = arith.constant 0 : i32
    %c0_i32_0 = arith.constant 0 : i32
    %c0_i32_1 = arith.constant 0 : i32
    return %c0_i32, %c0_i32_0 : i32, i32
  }
  func.func @transform_6(%arg0: i32) -> (i32, i32) {
    %c0_i32 = arith.constant 0 : i32
    %c0_i32_0 = arith.constant 0 : i32
    %c0_i32_1 = arith.constant 0 : i32
    return %c0_i32, %c0_i32_0 : i32, i32
  }
  func.func @transform_7(%arg0: i32) -> (i32, i32) {
    %c0_i32 = arith.constant 0 : i32
    %c0_i32_0 = arith.constant 0 : i32
    %c0_i32_1 = arith.constant 0 : i32
    return %c0_i32, %c0_i32_0 : i32, i32
  }
  func.func @transform_8(%arg0: i32) -> (i32, i32) {
    %c0_i32 = arith.constant 0 : i32
    %c0_i32_0 = arith.constant 0 : i32
    %c0_i32_1 = arith.constant 0 : i32
    return %c0_i32, %c0_i32_0 : i32, i32
  }
  func.func @transform_9(%arg0: i32) -> (i32, i32) {
    %c0_i32 = arith.constant 0 : i32
    %c0_i32_0 = arith.constant 0 : i32
    %c0_i32_1 = arith.constant 0 : i32
    return %c0_i32, %c0_i32_0 : i32, i32
  }
  func.func @transform_10(%arg0: i32) -> (i32, i32) {
    %c0_i32 = arith.constant 0 : i32
    %c0_i32_0 = arith.constant 0 : i32
    return %arg0, %c0_i32 : i32, i32
  }
}

</mosaic_0001>

<llo_original>
// kernel: social_light_forward.1
$region0: #{social_light_forward.1}
  #allocation0 [shape = 'u32[]', space=smem, size = 0x4, offset = 0x4, fixed_abs, tag = 'smem constant byte address 0x4 - core index']
  #allocation1 [shape = 'u32[144,128]{1,0:T(1,128)}', space=vmem, size = 0x12000, scoped, tag = 'internal scratch']
  %s0 = inlined_call_operand.vmem [shape: f32[16,40], index: 0, kind: input, shape index: {}]
  %s1 = inlined_call_operand.vmem [shape: f32[40,40], index: 1, kind: input, shape index: {}]
  %s2 = inlined_call_operand.vmem [shape: f32[40,128], index: 2, kind: input, shape index: {}]
  %s3 = inlined_call_operand.vmem [shape: f32[1,128], index: 3, kind: input, shape index: {}]
  %s4 = inlined_call_operand.vmem [shape: f32[128,128], index: 4, kind: input, shape index: {}]
  %s5 = inlined_call_operand.vmem [shape: f32[1,128], index: 5, kind: input, shape index: {}]
  %s6 = inlined_call_operand.vmem [shape: f32[128,128], index: 6, kind: input, shape index: {}]
  %s7 = inlined_call_operand.vmem [shape: f32[1,128], index: 7, kind: input, shape index: {}]
  %s8 = inlined_call_operand.hbm [shape: f32[128,128], index: 8, kind: input, shape index: {}]
  %s9 = inlined_call_operand.vmem [shape: f32[1,128], index: 9, kind: input, shape index: {}]
  %s10 = inlined_call_operand.vmem [shape: f32[16,128], index: 10, kind: output, shape index: {}]
  %s11 = sld [smem:[#allocation0]]
  $region54: #{social_light_forward.1} parent=0
    _
  %s13 = ssub.s32 1, %s11
  %s14 = scalar_select 0, %s13, %s11
  $region1: #{social_light_forward.1} parent=0
    #allocation2 [shape = 'u8[65536]{0}', space=vmem, size = 0x10000, scoped, tag = 'input window, operand 8, single buffered']
    #allocation3 [shape = 's32[1]{0}', space=sflag, size = 0x4, scoped, tag = 'scoped memory for social_light_forward.1']
    %15 = vsyncpa [#allocation3], 0
    // Predicated region
    $region2: #{social_light_forward.1} parent=1 // pred_check
      _
    $region3: #{social_light_forward.1} parent=1 // pred_check_branch
      %17 = sbr.rel (0) target = $region5
    $region4: #{social_light_forward.1} parent=1 // pred_region
      _
    $region5: #{social_light_forward.1} parent=1 // pred_fallthru
      _
    // Predicated region
    $region6: #{social_light_forward.1} parent=1 // pred_check
      _
    $region7: #{social_light_forward.1} parent=1 // pred_check_branch
      %19 = sbr.rel (0) target = $region9
    $region8: #{social_light_forward.1} parent=1 // pred_region
      _
    $region9: #{social_light_forward.1} parent=1 // pred_fallthru
      _
    // Predicated region
    $region10: #{social_light_forward.1} parent=1 // pred_check
      _
    $region11: #{social_light_forward.1} parent=1 // pred_check_branch
      %21 = sbr.rel (0) target = $region13
    $region12: #{social_light_forward.1} parent=1 // pred_region
      _
    $region13: #{social_light_forward.1} parent=1 // pred_fallthru
      _
    // Predicated region
    $region14: #{social_light_forward.1} parent=1 // pred_check
      _
    $region15: #{social_light_forward.1} parent=1 // pred_check_branch
      %23 = sbr.rel (0) target = $region17
    $region16: #{social_light_forward.1} parent=1 // pred_region
      _
    $region17: #{social_light_forward.1} parent=1 // pred_fallthru
      _
    // Predicated region
    $region18: #{social_light_forward.1} parent=1 // pred_check
      _
    $region19: #{social_light_forward.1} parent=1 // pred_check_branch
      %25 = sbr.rel (0) target = $region21
    $region20: #{social_light_forward.1} parent=1 // pred_region
      _
    $region21: #{social_light_forward.1} parent=1 // pred_fallthru
      _
    // Predicated region
    $region22: #{social_light_forward.1} parent=1 // pred_check
      _
    $region23: #{social_light_forward.1} parent=1 // pred_check_branch
      %27 = sbr.rel (0) target = $region25
    $region24: #{social_light_forward.1} parent=1 // pred_region
      _
    $region25: #{social_light_forward.1} parent=1 // pred_fallthru
      _
    // Predicated region
    $region26: #{social_light_forward.1} parent=1 // pred_check
      _
    $region27: #{social_light_forward.1} parent=1 // pred_check_branch
      %29 = sbr.rel (0) target = $region29
    $region28: #{social_light_forward.1} parent=1 // pred_region
      _
    $region29: #{social_light_forward.1} parent=1 // pred_fallthru
      _
    // Predicated region
    $region30: #{social_light_forward.1} parent=1 // pred_check
      _
    $region31: #{social_light_forward.1} parent=1 // pred_check_branch
      %31 = sbr.rel (0) target = $region33
    $region32: #{social_light_forward.1} parent=1 // pred_region
      _
    $region33: #{social_light_forward.1} parent=1 // pred_fallthru
      _
    // Predicated region
    $region34: #{social_light_forward.1} parent=1 // pred_check
      _
    $region35: #{social_light_forward.1} parent=1 // pred_check_branch
      %33 = sbr.rel (0) target = $region37
    $region36: #{social_light_forward.1} parent=1 // pred_region
      %s35 = ssub.s32 2048, 2048
      %36 = vsyncadd [#allocation3], %s35
      %s37 = sshll.u32 [#allocation2], 4
      %s38 = int_to_ptr.vmem [resolvable:$true] %s37
      %43 = dma.hbm_to_vmem [thread:$0]  %s8, 2048, %s38, [#allocation3], 128, 128, 8
    $region37: #{social_light_forward.1} parent=1 // pred_fallthru
      _
    // Predicated region
    $region38: #{social_light_forward.1} parent=1 // pred_check
      _
    $region39: #{social_light_forward.1} parent=1 // pred_check_branch
      %45 = sbr.rel (0) target = $region41
    $region40: #{social_light_forward.1} parent=1 // pred_region
      _
    $region41: #{social_light_forward.1} parent=1 // pred_fallthru
      _
    // Predicated region
    $region42: #{social_light_forward.1} parent=1 // pred_check
      _
    $region43: #{social_light_forward.1} parent=1 // pred_check_branch
      %47 = sbr.rel (0) target = $region45
    $region44: #{social_light_forward.1} parent=1 // pred_region
      %48 = dma.done [#allocation3], 2048
    $region45: #{social_light_forward.1} parent=1 // pred_fallthru
      _
    %v49 = vld [vmem:[%s0] sm:$0xff]
    %v50 = vld [vmem:[%s0 + $0x8] sm:$0xff]
    %v51 = vld [vmem:[%s1] sm:$0xff]
    %v52 = vld [vmem:[%s1 + $0x8] sm:$0xff]
    %v53 = vld [vmem:[%s1 + $0x10] sm:$0xff]
    %v54 = vld [vmem:[%s1 + $0x18] sm:$0xff]
    %v55 = vld [vmem:[%s1 + $0x20] sm:$0xff]
    %vm56 = vcmask 326656
    %v58 = vsel %vm56, %v49, 0
    %v61 = vsel %vm56, %v50, 0
    %63 = vmatprep.subr.mxu0 0.0
    %64 = vmatpush1.msra.mxu0 %v51
    %65 = vmatprep.subr.mxu0 0.0
    %66 = vmatpush1.msra.mxu0 %v52
    %67 = vmatprep.subr.mxu0 0.0
    %68 = vmatpush1.msra.mxu0 %v53
    %69 = vmatprep.subr.mxu0 0.0
    %70 = vmatpush1.msra.mxu0 %v54
    %71 = vmatprep.subr.mxu0 0.0
    %72 = vmatpush1.msra.mxu0 %v55
    %73 = vmatprep.subr.mxu0 0.0
    %74 = vmatpush1.msra.mxu0 0.0
    %75 = vmatprep.subr.mxu0 0.0
    %76 = vmatpush1.msra.mxu0 0.0
    %77 = vmatprep.subr.mxu0 0.0
    %78 = vmatpush1.msra.mxu0 0.0
    %79 = vmatprep.subr.mxu0 0.0
    %80 = vmatpush1.msra.mxu0 0.0
    %81 = vmatprep.subr.mxu0 0.0
    %82 = vmatpush1.msra.mxu0 0.0
    %83 = vmatprep.subr.mxu0 0.0
    %84 = vmatpush1.msra.mxu0 0.0
    %85 = vmatprep.subr.mxu0 0.0
    %86 = vmatpush1.msra.mxu0 0.0
    %87 = vmatprep.subr.mxu0 0.0
    %88 = vmatpush1.msra.mxu0 0.0
    %89 = vmatprep.subr.mxu0 0.0
    %90 = vmatpush1.msra.mxu0 0.0
    %91 = vmatprep.subr.mxu0 0.0
    %92 = vmatpush1.msra.mxu0 0.0
    %93 = vmatprep.subr.mxu0 0.0
    %94 = vmatpush1.msra.mxu0 0.0
    %95 = vmatprep.subr.mxu0 0.0
    %96 = vmatpush1.msra.mxu0 0.0
    %97 = vmatprep.subr.mxu0 0.0
    %98 = vmatpush1.msra.mxu0 0.0
    %99 = vmatprep.subr.mxu0 0.0
    %100 = vmatpush1.msra.mxu0 0.0
    %101 = vmatprep.subr.mxu0 0.0
    %102 = vmatpush1.msra.mxu0 0.0
    %103 = vmatprep.subr.mxu0 0.0
    %104 = vmatpush1.msra.mxu0 0.0
    %105 = vmatprep.subr.mxu0 0.0
    %106 = vmatpush1.msra.mxu0 0.0
    %107 = vmatprep.subr.mxu0 0.0
    %108 = vmatpush1.msra.mxu0 0.0
    %109 = vmatprep.subr.mxu0 0.0
    %110 = vmatpush1.msra.mxu0 0.0
    %111 = vmatprep.subr.mxu0 0.0
    %112 = vmatpush1.msra.mxu0 0.0
    %113 = vmatprep.subr.mxu0 0.0
    %114 = vmatpush1.msra.mxu0 0.0
    %115 = vmatprep.subr.mxu0 0.0
    %116 = vmatpush1.msra.mxu0 0.0
    %117 = vmatprep.subr.mxu0 0.0
    %118 = vmatpush1.msra.mxu0 0.0
    %119 = vmatprep.subr.mxu0 0.0
    %120 = vmatpush1.msra.mxu0 0.0
    %121 = vmatprep.subr.mxu0 0.0
    %122 = vmatpush1.msra.mxu0 0.0
    %123 = vmatprep.subr.mxu0 0.0
    %124 = vmatpush1.msra.mxu0 0.0
    %125 = vmatprep.subr.mxu0 0.0
    %126 = vmatpush1.msra.mxu0 0.0
    %127 = vmatprep.mubr.f32.mxu0 0.0
    %128 = vmatmul.mubr.f32.gmra.mrb[0].mxu0 %v58
    %v129 = vpop.f32.mrb[0].mxu0
    %v130 = vadd.f32 0.0, %v129
    %v131 = vpop.f32.mrb[0].mxu0
    %132 = vmatprep.mubr.f32.mxu0 0.0
    %133 = vmatmul.mubr.f32.gmra.mrb[0].mxu0 %v61
    %v134 = vpop.f32.mrb[0].mxu0
    %v135 = vadd.f32 0.0, %v134
    %v136 = vpop.f32.mrb[0].mxu0
    %137 = vdwg.mxu0
    %v138 = vsub.f32 %v49, %v130
    %v139 = vsub.f32 %v50, %v135
    %v140 = vmul.f32 %v138, %v138
    %v141 = vmul.f32 %v139, %v139
    %v143 = vsel %vm56, %v140, 0
    %v146 = vsel %vm56, %v141, 0
    %148 = vmatprep.subr.mxu0 0.0
    %149 = vmatpush1.msra.mxu0 %v51
    %150 = vmatprep.subr.mxu0 0.0
    %151 = vmatpush1.msra.mxu0 %v52
    %152 = vmatprep.subr.mxu0 0.0
    %153 = vmatpush1.msra.mxu0 %v53
    %154 = vmatprep.subr.mxu0 0.0
    %155 = vmatpush1.msra.mxu0 %v54
    %156 = vmatprep.subr.mxu0 0.0
    %157 = vmatpush1.msra.mxu0 %v55
    %158 = vmatprep.subr.mxu0 0.0
    %159 = vmatpush1.msra.mxu0 0.0
    %160 = vmatprep.subr.mxu0 0.0
    %161 = vmatpush1.msra.mxu0 0.0
    %162 = vmatprep.subr.mxu0 0.0
    %163 = vmatpush1.msra.mxu0 0.0
    %164 = vmatprep.subr.mxu0 0.0
    %165 = vmatpush1.msra.mxu0 0.0
    %166 = vmatprep.subr.mxu0 0.0
    %167 = vmatpush1.msra.mxu0 0.0
    %168 = vmatprep.subr.mxu0 0.0
    %169 = vmatpush1.msra.mxu0 0.0
    %170 = vmatprep.subr.mxu0 0.0
    %171 = vmatpush1.msra.mxu0 0.0
    %172 = vmatprep.subr.mxu0 0.0
    %173 = vmatpush1.msra.mxu0 0.0
    %174 = vmatprep.subr.mxu0 0.0
    %175 = vmatpush1.msra.mxu0 0.0
    %176 = vmatprep.subr.mxu0 0.0
    %177 = vmatpush1.msra.mxu0 0.0
    %178 = vmatprep.subr.mxu0 0.0
    %179 = vmatpush1.msra.mxu0 0.0
    %180 = vmatprep.subr.mxu0 0.0
    %181 = vmatpush1.msra.mxu0 0.0
    %182 = vmatprep.subr.mxu0 0.0
    %183 = vmatpush1.msra.mxu0 0.0
    %184 = vmatprep.subr.mxu0 0.0
    %185 = vmatpush1.msra.mxu0 0.0
    %186 = vmatprep.subr.mxu0 0.0
    %187 = vmatpush1.msra.mxu0 0.0
    %188 = vmatprep.subr.mxu0 0.0
    %189 = vmatpush1.msra.mxu0 0.0
    %190 = vmatprep.subr.mxu0 0.0
    %191 = vmatpush1.msra.mxu0 0.0
    %192 = vmatprep.subr.mxu0 0.0
    %193 = vmatpush1.msra.mxu0 0.0
    %194 = vmatprep.subr.mxu0 0.0
    %195 = vmatpush1.msra.mxu0 0.0
    %196 = vmatprep.subr.mxu0 0.0
    %197 = vmatpush1.msra.mxu0 0.0
    %198 = vmatprep.subr.mxu0 0.0
    %199 = vmatpush1.msra.mxu0 0.0
    %200 = vmatprep.subr.mxu0 0.0
    %201 = vmatpush1.msra.mxu0 0.0
    %202 = vmatprep.subr.mxu0 0.0
    %203 = vmatpush1.msra.mxu0 0.0
    %204 = vmatprep.subr.mxu0 0.0
    %205 = vmatpush1.msra.mxu0 0.0
    %206 = vmatprep.subr.mxu0 0.0
    %207 = vmatpush1.msra.mxu0 0.0
    %208 = vmatprep.subr.mxu0 0.0
    %209 = vmatpush1.msra.mxu0 0.0
    %210 = vmatprep.subr.mxu0 0.0
    %211 = vmatpush1.msra.mxu0 0.0
    %212 = vmatprep.mubr.f32.mxu0 0.0
    %213 = vmatmul.mubr.f32.gmra.mrb[0].mxu0 %v143
    %v214 = vpop.f32.mrb[0].mxu0
    %v215 = vadd.f32 1e-05, %v214
    %v216 = vpop.f32.mrb[0].mxu0
    %217 = vmatprep.mubr.f32.mxu0 0.0
    %218 = vmatmul.mubr.f32.gmra.mrb[0].mxu0 %v146
    %v219 = vpop.f32.mrb[0].mxu0
    %v220 = vadd.f32 1e-05, %v219
    %v221 = vpop.f32.mrb[0].mxu0
    %222 = vdwg.mxu0
    %v223 = vrsqrt.pop %v215
    %v224 = vrsqrt.pop %v220
    %v225 = vmul.f32 %v138, %v223
    %v226 = vmul.f32 %v139, %v224
    %v227 = vld [vmem:[%s2] sm:$0xff]
    %v228 = vld [vmem:[%s2 + $0x8] sm:$0xff]
    %v229 = vld [vmem:[%s2 + $0x10] sm:$0xff]
    %v230 = vld [vmem:[%s2 + $0x18] sm:$0xff]
    %v231 = vld [vmem:[%s2 + $0x20] sm:$0xff]
    %v232 = vld [vmem:[%s3] sm:$0x1]
    %v234 = vlaneseq
    %v235 = vshrl.u32 %v234, 7
    %v236 = vsub.s32 0, %v235
    %v237 = vrot.slane %v232, %v236
    %v240 = vsel %vm56, %v225, 0
    %v243 = vsel %vm56, %v226, 0
    %245 = vmatprep.subr.mxu0 0.0
    %246 = vmatpush1.msra.mxu0 %v227
    %247 = vmatprep.subr.mxu0 0.0
    %248 = vmatpush1.msra.mxu0 %v228
    %249 = vmatprep.subr.mxu0 0.0
    %250 = vmatpush1.msra.mxu0 %v229
    %251 = vmatprep.subr.mxu0 0.0
    %252 = vmatpush1.msra.mxu0 %v230
    %253 = vmatprep.subr.mxu0 0.0
    %254 = vmatpush1.msra.mxu0 %v231
    %255 = vmatprep.subr.mxu0 0.0
    %256 = vmatpush1.msra.mxu0 0.0
    %257 = vmatprep.subr.mxu0 0.0
    %258 = vmatpush1.msra.mxu0 0.0
    %259 = vmatprep.subr.mxu0 0.0
    %260 = vmatpush1.msra.mxu0 0.0
    %261 = vmatprep.subr.mxu0 0.0
    %262 = vmatpush1.msra.mxu0 0.0
    %263 = vmatprep.subr.mxu0 0.0
    %264 = vmatpush1.msra.mxu0 0.0
    %265 = vmatprep.subr.mxu0 0.0
    %266 = vmatpush1.msra.mxu0 0.0
    %267 = vmatprep.subr.mxu0 0.0
    %268 = vmatpush1.msra.mxu0 0.0
    %269 = vmatprep.subr.mxu0 0.0
    %270 = vmatpush1.msra.mxu0 0.0
    %271 = vmatprep.subr.mxu0 0.0
    %272 = vmatpush1.msra.mxu0 0.0
    %273 = vmatprep.subr.mxu0 0.0
    %274 = vmatpush1.msra.mxu0 0.0
    %275 = vmatprep.subr.mxu0 0.0
    %276 = vmatpush1.msra.mxu0 0.0
    %277 = vmatprep.subr.mxu0 0.0
    %278 = vmatpush1.msra.mxu0 0.0
    %279 = vmatprep.subr.mxu0 0.0
    %280 = vmatpush1.msra.mxu0 0.0
    %281 = vmatprep.subr.mxu0 0.0
    %282 = vmatpush1.msra.mxu0 0.0
    %283 = vmatprep.subr.mxu0 0.0
    %284 = vmatpush1.msra.mxu0 0.0
    %285 = vmatprep.subr.mxu0 0.0
    %286 = vmatpush1.msra.mxu0 0.0
    %287 = vmatprep.subr.mxu0 0.0
    %288 = vmatpush1.msra.mxu0 0.0
    %289 = vmatprep.subr.mxu0 0.0
    %290 = vmatpush1.msra.mxu0 0.0
    %291 = vmatprep.subr.mxu0 0.0
    %292 = vmatpush1.msra.mxu0 0.0
    %293 = vmatprep.subr.mxu0 0.0
    %294 = vmatpush1.msra.mxu0 0.0
    %295 = vmatprep.subr.mxu0 0.0
    %296 = vmatpush1.msra.mxu0 0.0
    %297 = vmatprep.subr.mxu0 0.0
    %298 = vmatpush1.msra.mxu0 0.0
    %299 = vmatprep.subr.mxu0 0.0
    %300 = vmatpush1.msra.mxu0 0.0
    %301 = vmatprep.subr.mxu0 0.0
    %302 = vmatpush1.msra.mxu0 0.0
    %303 = vmatprep.subr.mxu0 0.0
    %304 = vmatpush1.msra.mxu0 0.0
    %305 = vmatprep.subr.mxu0 0.0
    %306 = vmatpush1.msra.mxu0 0.0
    %307 = vmatprep.subr.mxu0 0.0
    %308 = vmatpush1.msra.mxu0 0.0
    %309 = vmatprep.mubr.f32.mxu0 0.0
    %310 = vmatmul.mubr.f32.gmra.mrb[0].mxu0 %v240
    %v311 = vpop.f32.mrb[0].mxu0
    %v312 = vadd.f32 %v237, %v311
    %v313 = vpop.f32.mrb[0].mxu0
    %314 = vmatprep.mubr.f32.mxu0 0.0
    %315 = vmatmul.mubr.f32.gmra.mrb[0].mxu0 %v243
    %v316 = vpop.f32.mrb[0].mxu0
    %v317 = vadd.f32 %v237, %v316
    %v318 = vpop.f32.mrb[0].mxu0
    %319 = vdwg.mxu0
    %v320 = vmax.f32 %v312, 0.0
    %v321 = vmax.f32 %v317, 0.0
    %v322 = vld [vmem:[%s4] sm:$0xff]
    %v323 = vld [vmem:[%s4 + $0x8] sm:$0xff]
    %v324 = vld [vmem:[%s4 + $0x10] sm:$0xff]
    %v325 = vld [vmem:[%s4 + $0x18] sm:$0xff]
    %v326 = vld [vmem:[%s4 + $0x20] sm:$0xff]
    %v327 = vld [vmem:[%s4 + $0x28] sm:$0xff]
    %v328 = vld [vmem:[%s4 + $0x30] sm:$0xff]
    %v329 = vld [vmem:[%s4 + $0x38] sm:$0xff]
    %v330 = vld [vmem:[%s4 + $0x40] sm:$0xff]
    %v331 = vld [vmem:[%s4 + $0x48] sm:$0xff]
    %v332 = vld [vmem:[%s4 + $0x50] sm:$0xff]
    %v333 = vld [vmem:[%s4 + $0x58] sm:$0xff]
    %v334 = vld [vmem:[%s4 + $0x60] sm:$0xff]
    %v335 = vld [vmem:[%s4 + $0x68] sm:$0xff]
    %v336 = vld [vmem:[%s4 + $0x70] sm:$0xff]
    %v337 = vld [vmem:[%s4 + $0x78] sm:$0xff]
    %v338 = vld [vmem:[%s5] sm:$0x1]
    %v340 = vlaneseq
    %v341 = vshrl.u32 %v340, 7
    %v342 = vsub.s32 0, %v341
    %v343 = vrot.slane %v338, %v342
    %345 = vmatprep.subr.mxu0 0.0
    %346 = vmatpush1.msra.mxu0 %v322
    %347 = vmatprep.subr.mxu0 0.0
    %348 = vmatpush1.msra.mxu0 %v323
    %349 = vmatprep.subr.mxu0 0.0
    %350 = vmatpush1.msra.mxu0 %v324
    %351 = vmatprep.subr.mxu0 0.0
    %352 = vmatpush1.msra.mxu0 %v325
    %353 = vmatprep.subr.mxu0 0.0
    %354 = vmatpush1.msra.mxu0 %v326
    %355 = vmatprep.subr.mxu0 0.0
    %356 = vmatpush1.msra.mxu0 %v327
    %357 = vmatprep.subr.mxu0 0.0
    %358 = vmatpush1.msra.mxu0 %v328
    %359 = vmatprep.subr.mxu0 0.0
    %360 = vmatpush1.msra.mxu0 %v329
    %361 = vmatprep.subr.mxu0 0.0
    %362 = vmatpush1.msra.mxu0 %v330
    %363 = vmatprep.subr.mxu0 0.0
    %364 = vmatpush1.msra.mxu0 %v331
    %365 = vmatprep.subr.mxu0 0.0
    %366 = vmatpush1.msra.mxu0 %v332
    %367 = vmatprep.subr.mxu0 0.0
    %368 = vmatpush1.msra.mxu0 %v333
    %369 = vmatprep.subr.mxu0 0.0
    %370 = vmatpush1.msra.mxu0 %v334
    %371 = vmatprep.subr.mxu0 0.0
    %372 = vmatpush1.msra.mxu0 %v335
    %373 = vmatprep.subr.mxu0 0.0
    %374 = vmatpush1.msra.mxu0 %v336
    %375 = vmatprep.subr.mxu0 0.0
    %376 = vmatpush1.msra.mxu0 %v337
    %377 = vmatprep.subr.mxu0 0.0
    %378 = vmatpush1.msra.mxu0 0.0
    %379 = vmatprep.subr.mxu0 0.0
    %380 = vmatpush1.msra.mxu0 0.0
    %381 = vmatprep.subr.mxu0 0.0
    %382 = vmatpush1.msra.mxu0 0.0
    %383 = vmatprep.subr.mxu0 0.0
    %384 = vmatpush1.msra.mxu0 0.0
    %385 = vmatprep.subr.mxu0 0.0
    %386 = vmatpush1.msra.mxu0 0.0
    %387 = vmatprep.subr.mxu0 0.0
    %388 = vmatpush1.msra.mxu0 0.0
    %389 = vmatprep.subr.mxu0 0.0
    %390 = vmatpush1.msra.mxu0 0.0
    %391 = vmatprep.subr.mxu0 0.0
    %392 = vmatpush1.msra.mxu0 0.0
    %393 = vmatprep.subr.mxu0 0.0
    %394 = vmatpush1.msra.mxu0 0.0
    %395 = vmatprep.subr.mxu0 0.0
    %396 = vmatpush1.msra.mxu0 0.0
    %397 = vmatprep.subr.mxu0 0.0
    %398 = vmatpush1.msra.mxu0 0.0
    %399 = vmatprep.subr.mxu0 0.0
    %400 = vmatpush1.msra.mxu0 0.0
    %401 = vmatprep.subr.mxu0 0.0
    %402 = vmatpush1.msra.mxu0 0.0
    %403 = vmatprep.subr.mxu0 0.0
    %404 = vmatpush1.msra.mxu0 0.0
    %405 = vmatprep.subr.mxu0 0.0
    %406 = vmatpush1.msra.mxu0 0.0
    %407 = vmatprep.subr.mxu0 0.0
    %408 = vmatpush1.msra.mxu0 0.0
    %409 = vmatprep.mubr.f32.mxu0 0.0
    %410 = vmatmul.mubr.f32.gmra.mrb[0].mxu0 %v320
    %v411 = vpop.f32.mrb[0].mxu0
    %v412 = vadd.f32 %v343, %v411
    %v413 = vpop.f32.mrb[0].mxu0
    %414 = vmatprep.mubr.f32.mxu0 0.0
    %415 = vmatmul.mubr.f32.gmra.mrb[0].mxu0 %v321
    %v416 = vpop.f32.mrb[0].mxu0
    %v417 = vadd.f32 %v343, %v416
    %v418 = vpop.f32.mrb[0].mxu0
    %419 = vdwg.mxu0
    %v420 = vmax.f32 %v412, 0.0
    %v421 = vmax.f32 %v417, 0.0
    %v422 = vld [vmem:[%s6] sm:$0xff]
    %v423 = vld [vmem:[%s6 + $0x8] sm:$0xff]
    %v424 = vld [vmem:[%s6 + $0x10] sm:$0xff]
    %v425 = vld [vmem:[%s6 + $0x18] sm:$0xff]
    %v426 = vld [vmem:[%s6 + $0x20] sm:$0xff]
    %v427 = vld [vmem:[%s6 + $0x28] sm:$0xff]
    %v428 = vld [vmem:[%s6 + $0x30] sm:$0xff]
    %v429 = vld [vmem:[%s6 + $0x38] sm:$0xff]
    %v430 = vld [vmem:[%s6 + $0x40] sm:$0xff]
    %v431 = vld [vmem:[%s6 + $0x48] sm:$0xff]
    %v432 = vld [vmem:[%s6 + $0x50] sm:$0xff]
    %v433 = vld [vmem:[%s6 + $0x58] sm:$0xff]
    %v434 = vld [vmem:[%s6 + $0x60] sm:$0xff]
    %v435 = vld [vmem:[%s6 + $0x68] sm:$0xff]
    %v436 = vld [vmem:[%s6 + $0x70] sm:$0xff]
    %v437 = vld [vmem:[%s6 + $0x78] sm:$0xff]
    %v438 = vld [vmem:[%s7] sm:$0x1]
    %v440 = vlaneseq
    %v441 = vshrl.u32 %v440, 7
    %v442 = vsub.s32 0, %v441
    %v443 = vrot.slane %v438, %v442
    %445 = vmatprep.subr.mxu0 0.0
    %446 = vmatpush1.msra.mxu0 %v422
    %447 = vmatprep.subr.mxu0 0.0
    %448 = vmatpush1.msra.mxu0 %v423
    %449 = vmatprep.subr.mxu0 0.0
    %450 = vmatpush1.msra.mxu0 %v424
    %451 = vmatprep.subr.mxu0 0.0
    %452 = vmatpush1.msra.mxu0 %v425
    %453 = vmatprep.subr.mxu0 0.0
    %454 = vmatpush1.msra.mxu0 %v426
    %455 = vmatprep.subr.mxu0 0.0
    %456 = vmatpush1.msra.mxu0 %v427
    %457 = vmatprep.subr.mxu0 0.0
    %458 = vmatpush1.msra.mxu0 %v428
    %459 = vmatprep.subr.mxu0 0.0
    %460 = vmatpush1.msra.mxu0 %v429
    %461 = vmatprep.subr.mxu0 0.0
    %462 = vmatpush1.msra.mxu0 %v430
    %463 = vmatprep.subr.mxu0 0.0
    %464 = vmatpush1.msra.mxu0 %v431
    %465 = vmatprep.subr.mxu0 0.0
    %466 = vmatpush1.msra.mxu0 %v432
    %467 = vmatprep.subr.mxu0 0.0
    %468 = vmatpush1.msra.mxu0 %v433
    %469 = vmatprep.subr.mxu0 0.0
    %470 = vmatpush1.msra.mxu0 %v434
    %471 = vmatprep.subr.mxu0 0.0
    %472 = vmatpush1.msra.mxu0 %v435
    %473 = vmatprep.subr.mxu0 0.0
    %474 = vmatpush1.msra.mxu0 %v436
    %475 = vmatprep.subr.mxu0 0.0
    %476 = vmatpush1.msra.mxu0 %v437
    %477 = vmatprep.subr.mxu0 0.0
    %478 = vmatpush1.msra.mxu0 0.0
    %479 = vmatprep.subr.mxu0 0.0
    %480 = vmatpush1.msra.mxu0 0.0
    %481 = vmatprep.subr.mxu0 0.0
    %482 = vmatpush1.msra.mxu0 0.0
    %483 = vmatprep.subr.mxu0 0.0
    %484 = vmatpush1.msra.mxu0 0.0
    %485 = vmatprep.subr.mxu0 0.0
    %486 = vmatpush1.msra.mxu0 0.0
    %487 = vmatprep.subr.mxu0 0.0
    %488 = vmatpush1.msra.mxu0 0.0
    %489 = vmatprep.subr.mxu0 0.0
    %490 = vmatpush1.msra.mxu0 0.0
    %491 = vmatprep.subr.mxu0 0.0
    %492 = vmatpush1.msra.mxu0 0.0
    %493 = vmatprep.subr.mxu0 0.0
    %494 = vmatpush1.msra.mxu0 0.0
    %495 = vmatprep.subr.mxu0 0.0
    %496 = vmatpush1.msra.mxu0 0.0
    %497 = vmatprep.subr.mxu0 0.0
    %498 = vmatpush1.msra.mxu0 0.0
    %499 = vmatprep.subr.mxu0 0.0
    %500 = vmatpush1.msra.mxu0 0.0
    %501 = vmatprep.subr.mxu0 0.0
    %502 = vmatpush1.msra.mxu0 0.0
    %503 = vmatprep.subr.mxu0 0.0
    %504 = vmatpush1.msra.mxu0 0.0
    %505 = vmatprep.subr.mxu0 0.0
    %506 = vmatpush1.msra.mxu0 0.0
    %507 = vmatprep.subr.mxu0 0.0
    %508 = vmatpush1.msra.mxu0 0.0
    %509 = vmatprep.mubr.f32.mxu0 0.0
    %510 = vmatmul.mubr.f32.gmra.mrb[0].mxu0 %v420
    %v511 = vpop.f32.mrb[0].mxu0
    %v512 = vadd.f32 %v443, %v511
    %v513 = vpop.f32.mrb[0].mxu0
    %514 = vmatprep.mubr.f32.mxu0 0.0
    %515 = vmatmul.mubr.f32.gmra.mrb[0].mxu0 %v421
    %v516 = vpop.f32.mrb[0].mxu0
    %v517 = vadd.f32 %v443, %v516
    %v518 = vpop.f32.mrb[0].mxu0
    %519 = vdwg.mxu0
    %v520 = vmax.f32 %v512, 0.0
    %v521 = vmax.f32 %v517, 0.0
    %v522 = vld [vmem:[#allocation2] sm:$0xff]
    %v523 = vld [vmem:[#allocation2 + $0x8] sm:$0xff]
    %v524 = vld [vmem:[#allocation2 + $0x10] sm:$0xff]
    %v525 = vld [vmem:[#allocation2 + $0x18] sm:$0xff]
    %v526 = vld [vmem:[#allocation2 + $0x20] sm:$0xff]
    %v527 = vld [vmem:[#allocation2 + $0x28] sm:$0xff]
    %v528 = vld [vmem:[#allocation2 + $0x30] sm:$0xff]
    %v529 = vld [vmem:[#allocation2 + $0x38] sm:$0xff]
    %v530 = vld [vmem:[#allocation2 + $0x40] sm:$0xff]
    %v531 = vld [vmem:[#allocation2 + $0x48] sm:$0xff]
    %v532 = vld [vmem:[#allocation2 + $0x50] sm:$0xff]
    %v533 = vld [vmem:[#allocation2 + $0x58] sm:$0xff]
    %v534 = vld [vmem:[#allocation2 + $0x60] sm:$0xff]
    %v535 = vld [vmem:[#allocation2 + $0x68] sm:$0xff]
    %v536 = vld [vmem:[#allocation2 + $0x70] sm:$0xff]
    %v537 = vld [vmem:[#allocation2 + $0x78] sm:$0xff]
    %v538 = vld [vmem:[%s9] sm:$0x1]
    %v540 = vlaneseq
    %v541 = vshrl.u32 %v540, 7
    %v542 = vsub.s32 0, %v541
    %v543 = vrot.slane %v538, %v542
    %545 = vmatprep.subr.mxu0 0.0
    %546 = vmatpush1.msra.mxu0 %v522
    %547 = vmatprep.subr.mxu0 0.0
    %548 = vmatpush1.msra.mxu0 %v523
    %549 = vmatprep.subr.mxu0 0.0
    %550 = vmatpush1.msra.mxu0 %v524
    %551 = vmatprep.subr.mxu0 0.0
    %552 = vmatpush1.msra.mxu0 %v525
    %553 = vmatprep.subr.mxu0 0.0
    %554 = vmatpush1.msra.mxu0 %v526
    %555 = vmatprep.subr.mxu0 0.0
    %556 = vmatpush1.msra.mxu0 %v527
    %557 = vmatprep.subr.mxu0 0.0
    %558 = vmatpush1.msra.mxu0 %v528
    %559 = vmatprep.subr.mxu0 0.0
    %560 = vmatpush1.msra.mxu0 %v529
    %561 = vmatprep.subr.mxu0 0.0
    %562 = vmatpush1.msra.mxu0 %v530
    %563 = vmatprep.subr.mxu0 0.0
    %564 = vmatpush1.msra.mxu0 %v531
    %565 = vmatprep.subr.mxu0 0.0
    %566 = vmatpush1.msra.mxu0 %v532
    %567 = vmatprep.subr.mxu0 0.0
    %568 = vmatpush1.msra.mxu0 %v533
    %569 = vmatprep.subr.mxu0 0.0
    %570 = vmatpush1.msra.mxu0 %v534
    %571 = vmatprep.subr.mxu0 0.0
    %572 = vmatpush1.msra.mxu0 %v535
    %573 = vmatprep.subr.mxu0 0.0
    %574 = vmatpush1.msra.mxu0 %v536
    %575 = vmatprep.subr.mxu0 0.0
    %576 = vmatpush1.msra.mxu0 %v537
    %577 = vmatprep.subr.mxu0 0.0
    %578 = vmatpush1.msra.mxu0 0.0
    %579 = vmatprep.subr.mxu0 0.0
    %580 = vmatpush1.msra.mxu0 0.0
    %581 = vmatprep.subr.mxu0 0.0
    %582 = vmatpush1.msra.mxu0 0.0
    %583 = vmatprep.subr.mxu0 0.0
    %584 = vmatpush1.msra.mxu0 0.0
    %585 = vmatprep.subr.mxu0 0.0
    %586 = vmatpush1.msra.mxu0 0.0
    %587 = vmatprep.subr.mxu0 0.0
    %588 = vmatpush1.msra.mxu0 0.0
    %589 = vmatprep.subr.mxu0 0.0
    %590 = vmatpush1.msra.mxu0 0.0
    %591 = vmatprep.subr.mxu0 0.0
    %592 = vmatpush1.msra.mxu0 0.0
    %593 = vmatprep.subr.mxu0 0.0
    %594 = vmatpush1.msra.mxu0 0.0
    %595 = vmatprep.subr.mxu0 0.0
    %596 = vmatpush1.msra.mxu0 0.0
    %597 = vmatprep.subr.mxu0 0.0
    %598 = vmatpush1.msra.mxu0 0.0
    %599 = vmatprep.subr.mxu0 0.0
    %600 = vmatpush1.msra.mxu0 0.0
    %601 = vmatprep.subr.mxu0 0.0
    %602 = vmatpush1.msra.mxu0 0.0
    %603 = vmatprep.subr.mxu0 0.0
    %604 = vmatpush1.msra.mxu0 0.0
    %605 = vmatprep.subr.mxu0 0.0
    %606 = vmatpush1.msra.mxu0 0.0
    %607 = vmatprep.subr.mxu0 0.0
    %608 = vmatpush1.msra.mxu0 0.0
    %609 = vmatprep.mubr.f32.mxu0 0.0
    %610 = vmatmul.mubr.f32.gmra.mrb[0].mxu0 %v520
    %v611 = vpop.f32.mrb[0].mxu0
    %v612 = vadd.f32 %v543, %v611
    %v613 = vpop.f32.mrb[0].mxu0
    %614 = vmatprep.mubr.f32.mxu0 0.0
    %615 = vmatmul.mubr.f32.gmra.mrb[0].mxu0 %v521
    %v616 = vpop.f32.mrb[0].mxu0
    %v617 = vadd.f32 %v543, %v616
    %v618 = vpop.f32.mrb[0].mxu0
    %619 = vdwg.mxu0
    %v620 = vlaneseq
    %v621 = vand.u32 %v620, 127
    %vm622 = vcmp.lt.s32.totalorder %v621, 4
    %v623 = vsel %vm622, %v612, -1e+30
    %v624 = vsel %vm622, %v617, -1e+30
    %625 = vmax.xlane.f32.xlu0 %v623
    %v626 = vpop.xlane.xlu0 %625
    %627 = vmax.xlane.f32.xlu0 %v624
    %v628 = vpop.xlane.xlu0 %627
    %v629 = vsub.f32 %v623, %v626
    %v630 = vsub.f32 %v624, %v628
    %v631 = vmul.f32 %v629, 1.442695
    %v632 = vpow.pop %v631
    %v633 = vmul.f32 %v630, 1.442695
    %v634 = vpow.pop %v633
    %v635 = vsel %vm622, %v632, 0.0
    %v636 = vsel %vm622, %v634, 0.0
    %637 = vadd.xlane.f32.xlu0 %v635
    %v638 = vpop.xlane.xlu0 %637
    %639 = vadd.xlane.f32.xlu0 %v636
    %v640 = vpop.xlane.xlu0 %639
    %v641 = vrcp.pop %v638
    %v642 = vrcp.pop %v640
    %v643 = vmul.f32 %v635, %v641
    %v644 = vmul.f32 %v636, %v642
    %v645 = vsel %vm622, %v643, %v612
    %v646 = vsel %vm622, %v644, %v617
    %647 = vst [vmem:[%s10] sm:$0xff] %v645
    %648 = vst [vmem:[%s10 + $0x8] sm:$0xff] %v646
    // Predicated region
    $region46: #{social_light_forward.1} parent=1 // pred_check
      _
    $region47: #{social_light_forward.1} parent=1 // pred_check_branch
      %650 = sbr.rel (0) target = $region49
    $region48: #{social_light_forward.1} parent=1 // pred_region
      _
    $region49: #{social_light_forward.1} parent=1 // pred_fallthru
      _
    // Predicated region
    $region50: #{social_light_forward.1} parent=1 // pred_check
      _
    $region51: #{social_light_forward.1} parent=1 // pred_check_branch
      %652 = sbr.rel (0) target = $region53
    $region52: #{social_light_forward.1} parent=1 // pred_region
      _
    $region53: #{social_light_forward.1} parent=1 // pred_fallthru
      _
    %653 = vsyncpa [#allocation3], 1

</llo_original>
